<compile_context>
chip_gen: v6e
topology: v6e:2x2x1
jax: 0.10.0
libtpu: 0.0.40
codegen_flags: <defaults>
</compile_context>

<pallas_src>
import math

import jax
import jax.numpy as jnp
from jax.experimental import pallas as pl
from jax.experimental.pallas import tpu as pltpu


# ----------------------------------------------------------------------------
# funcs that Lambda wraps (mirrors radionets' `flatten`)
# ----------------------------------------------------------------------------
def flatten(x):
    return x.reshape(x.shape[0], -1)


# ----------------------------------------------------------------------------
# constants / generation-aware budgets
# ----------------------------------------------------------------------------
_LANE = 128
_SUBLANE = 8
_SMALL_BYTES = 64 * 1024              # below this, plain XLA beats a kernel launch
_WHOLE_ARRAY_VMEM_CAP = 8 * 1024 * 1024  # in+out cap for the single-block fallback


def _per_buffer_budget():
    """(per-buffer tile bytes, vmem_limit_bytes or None) for the current chip."""
    try:
        kind = jax.devices()[0].device_kind.lower()
    except Exception:
        kind = ""
    if "v7" in kind:
        # 4 buffers x 6 MiB = 24 MiB <= 32 MiB scoped (64 MiB physical per TC)
        return 6 * 1024 * 1024, 32 << 20
    if "v6" in kind:
        return 4 * 1024 * 1024, 64 << 20
    # v5e (16 MiB scoped default) and anything unknown: stay conservative.
    return 2 * 1024 * 1024, None


# ----------------------------------------------------------------------------
# slab selection: sublane/lane-dense 2D view of a contiguous buffer
# ----------------------------------------------------------------------------
def _pick_slab(total, itemsize, budget):
    """Choose (rows, cols, row_tile) for a flat buffer of `total` elements.

    cols is a multiple of 128 dividing `total` (no partial lane blocks,
    unmasked wide vst); rows is preferably a multiple of 8 (dense sublanes);
    row_tile keeps each buffer under `budget` bytes.  Returns None if the
    total is not divisible by 128 (caller falls back).
    """
    if total % _LANE != 0:
        return None
    max_cols_by_budget = max(_LANE, (budget // (_SUBLANE * itemsize)) // _LANE * _LANE)
    c_start = max(_LANE, min(max_cols_by_budget, (total // _LANE) * _LANE))

    cols = None
    c = c_start
    while c >= _LANE:                     # prefer rows % 8 == 0 (full vregs)
        if total % c == 0 and (total // c) % _SUBLANE == 0:
            cols = c
            break
        c -= _LANE
    if cols is None:
        c = c_start
        while c >= _LANE:                 # next best: any multiple-of-128 divisor
            if total % c == 0:
                cols = c
                break
            c -= _LANE
    if cols is None:
        return None

    rows = total // cols
    max_rows_by_budget = max(1, budget // (cols * itemsize))
    if rows <= max_rows_by_budget:
        row_tile = rows                   # full dim -> always legal, single block
    else:
        row_tile = max(_SUBLANE, (max_rows_by_budget // _SUBLANE) * _SUBLANE)
        rt = row_tile                     # prefer a tile dividing rows exactly
        while rt >= _SUBLANE:
            if rows % rt == 0:
                row_tile = rt
                break
            rt -= _SUBLANE
    return rows, cols, row_tile


# ----------------------------------------------------------------------------
# Pallas kernels
# ----------------------------------------------------------------------------
def _dma_copy_kernel(x_hbm, o_hbm, sem):
    # single HBM -> HBM DMA: no VMEM staging, no vreg traffic
    cp = pltpu.make_async_copy(x_hbm, o_hbm, sem)
    cp.start()
    cp.wait()


def _make_elementwise_kernel(func, out_dtype):
    def kernel(x_ref, o_ref):
        o_ref[...] = func(x_ref[...]).astype(out_dtype)
    return kernel


def _make_whole_array_kernel(func):
    def kernel(x_ref, o_ref):
        o_ref[...] = func(x_ref[...]).astype(o_ref.dtype)
    return kernel


# ----------------------------------------------------------------------------
# pallas_call wrappers
# ----------------------------------------------------------------------------
def _pallas_flatten_dma(x):
    """Explicit flatten-as-kernel: one HBM->HBM DMA of the (free) 2D view."""
    N = x.shape[0]
    cols = int(math.prod(x.shape[1:])) if x.ndim > 1 else 1
    x2 = x.reshape(N, cols)                       # free metadata reshape
    return pl.pallas_call(
        _dma_copy_kernel,
        out_shape=jax.ShapeDtypeStruct((N, cols), x.dtype),
        in_specs=[pl.BlockSpec(memory_space=pl.ANY)],
        out_specs=pl.BlockSpec(memory_space=pl.ANY),
        scratch_shapes=[pltpu.SemaphoreType.DMA(())],
    )(x2)


def _tiled_slab_call(kernel, x2, out_dtype, rows, cols, row_tile,
                     *, flops, vmem_limit, donate):
    itemsize = max(jnp.dtype(x2.dtype).itemsize, jnp.dtype(out_dtype).itemsize)
    cp_kwargs = dict(dimension_semantics=("parallel",))
    if vmem_limit is not None:
        cp_kwargs["vmem_limit_bytes"] = vmem_limit
    call_kwargs = {}
    if donate and jnp.dtype(out_dtype) == jnp.dtype(x2.dtype):
        call_kwargs["input_output_aliases"] = {0: 0}
    return pl.pallas_call(
        kernel,
        out_shape=jax.ShapeDtypeStruct((rows, cols), out_dtype),
        grid=(pl.cdiv(rows, row_tile),),
        in_specs=[pl.BlockSpec((row_tile, cols), lambda i: (i, 0))],
        out_specs=pl.BlockSpec((row_tile, cols), lambda i: (i, 0)),
        compiler_params=pltpu.CompilerParams(**cp_kwargs),
        cost_estimate=pl.CostEstimate(
            flops=flops, transcendentals=0,
            bytes_accessed=int(2 * rows * cols * itemsize)),
        **call_kwargs,
    )(x2)


def _pallas_apply_whole(func, x):
    """Fallback for arbitrary block-local funcs: single whole-array block,
    guarded so it cannot exceed VMEM (important on v7x's 64 MiB)."""
    out_sd = jax.eval_shape(func, jax.ShapeDtypeStruct(x.shape, x.dtype))
    in_bytes = int(x.size) * jnp.dtype(x.dtype).itemsize
    out_bytes = int(math.prod(out_sd.shape)) * jnp.dtype(out_sd.dtype).itemsize
    if in_bytes + out_bytes > _WHOLE_ARRAY_VMEM_CAP:
        # TODO(synk): arbitrary non-elementwise funcs cannot be tiled
        # generically; large activations run as plain XLA instead.
        return func(x)
    return pl.pallas_call(
        _make_whole_array_kernel(func),
        out_shape=jax.ShapeDtypeStruct(out_sd.shape, out_sd.dtype),
    )(x)


def _pallas_apply_elementwise(func, x, out_dtype, *, donate=False):
    """Elementwise Lambda: sublane/lane-dense slab, 1-D grid over row blocks."""
    shape = x.shape
    total = int(math.prod(shape)) if shape else 1
    itemsize = max(jnp.dtype(x.dtype).itemsize, jnp.dtype(out_dtype).itemsize)
    if total * itemsize < _SMALL_BYTES:
        # kernel launch + pipeline prologue dwarfs the data movement
        return func(x).astype(out_dtype)
    budget, vmem_limit = _per_buffer_budget()
    slab = _pick_slab(total, itemsize, budget)
    if slab is None:
        return _pallas_apply_whole(func, x)       # size-guarded fallback
    rows, cols, row_tile = slab
    x2 = x.reshape(rows, cols)                    # free view on contiguous data
    y2 = _tiled_slab_call(
        _make_elementwise_kernel(func, out_dtype), x2, out_dtype,
        rows, cols, row_tile, flops=total, vmem_limit=vmem_limit, donate=donate)
    return y2.reshape(shape)


# ----------------------------------------------------------------------------
# Module
# ----------------------------------------------------------------------------
class Lambda:
    """JAX/Pallas port of radionets' `Lambda(func)` (no parameters).

    * `Lambda(flatten)` is a metadata-only reshape (free).  `copy=True` forces
      an explicit Pallas kernel that does the copy as a single HBM->HBM DMA.
    * `elementwise=True` asserts func(x)[i] depends only on x[i], enabling the
      tiled, pipelined, sublane/lane-dense slab path.  Funcs that mix values
      across elements (softmax, norms, ...) must NOT set this flag.
    * `donate_input=True` aliases the output onto the input buffer when the
      dtype is preserved (halves peak HBM allocation if the input is donated).
    """

    def __init__(self, func, elementwise=False, copy=False, donate_input=False):
        self.func = func
        self.elementwise = elementwise
        self.copy = copy
        self.donate_input = donate_input

    def __call__(self, x):
        if self.func is flatten:
            if self.copy:
                return _pallas_flatten_dma(x)
            return flatten(x)                     # metadata-only, zero HBM traffic
        if self.elementwise:
            out_sd = jax.eval_shape(
                self.func, jax.ShapeDtypeStruct(x.shape, x.dtype))
            if out_sd.shape == x.shape:
                return _pallas_apply_elementwise(
                    self.func, x, out_sd.dtype, donate=self.donate_input)
        return _pallas_apply_whole(self.func, x)


# ----------------------------------------------------------------------------
# Demo / correctness check
# ----------------------------------------------------------------------------
if __name__ == "__main__":
    key = jax.random.PRNGKey(0)
    k1, k2 = jax.random.split(key)
    x = jax.random.normal(k1, (2, 4, 16, 16), dtype=jnp.float32)   # NCHW

    # 1) canonical radionets usage: Lambda(flatten) -> free metadata reshape
    y = Lambda(flatten)(x)
    jax.block_until_ready(y)
    ref = x.reshape(x.shape[0], -1)
    assert y.shape == (2, 4 * 16 * 16)
    assert jnp.array_equal(y, ref), "flatten (reshape) mismatch"

    # 2) explicit flatten kernel: single HBM->HBM DMA, no VMEM staging
    y_dma = Lambda(flatten, copy=True)(x)
    jax.block_until_ready(y_dma)
    assert jnp.array_equal(y_dma, ref), "flatten DMA kernel mismatch"

    # 3) elementwise Lambda, big enough for the tiled sublane/lane-dense path
    xb = jax.random.normal(k2, (8, 8, 32, 32), dtype=jnp.float32)  # 256 KiB slab
    y2 = Lambda(lambda a: a * 2.0 + 1.0, elementwise=True)(xb)
    jax.block_until_ready(y2)
    assert y2.shape == xb.shape
    assert jnp.allclose(y2, xb * 2.0 + 1.0), "elementwise lambda kernel mismatch"

    # 4) tiny elementwise input short-circuits to plain XLA (same semantics)
    y3 = Lambda(lambda a: a * 2.0 + 1.0, elementwise=True)(x)
    jax.block_until_ready(y3)
    assert jnp.allclose(y3, x * 2.0 + 1.0), "small elementwise mismatch"

    # 5) generic fallback path (VMEM-guarded whole-array block)
    y4 = Lambda(lambda a: jnp.tanh(a))(x)
    jax.block_until_ready(y4)
    assert jnp.allclose(y4, jnp.tanh(x), atol=1e-6), "fallback lambda mismatch"

    print("KERNEL_OK")
</pallas_src>

<mosaic_0001>
module attributes {stable_mosaic.version = 11 : i64} {
  func.func @_dma_copy_kernel(%arg0: memref<2x1024xf32, #tpu.memory_space<any>>, %arg1: memref<2x1024xf32, #tpu.memory_space<any>>, %arg2: memref<!tpu.dma_semaphore, #tpu.memory_space<semaphore_mem>>) attributes {dimension_semantics = [], scalar_prefetch = 0 : i64, scratch_operands = 1 : i64, tpu.core_type = #tpu.core_type<tc>} {
    tpu.enqueue_dma source(%arg0 : memref<2x1024xf32, #tpu.memory_space<any>>) target(%arg1 : memref<2x1024xf32, #tpu.memory_space<any>>) target_semaphore(%arg2 : memref<!tpu.dma_semaphore, #tpu.memory_space<semaphore_mem>>)
    tpu.wait_dma2 semaphore(%arg2 : memref<!tpu.dma_semaphore, #tpu.memory_space<semaphore_mem>>) src(%arg0 : memref<2x1024xf32, #tpu.memory_space<any>>) dst(%arg1 : memref<2x1024xf32, #tpu.memory_space<any>>)
    return
  }
}

</mosaic_0001>

<llo_original>
// kernel: tpu_custom_call.1
$region0: #{tpu_custom_call.1}
  #allocation0 [shape = 'u32[]', space=smem, size = 0x4, offset = 0x4, fixed_abs, tag = 'smem constant byte address 0x4 - core index']
  #allocation1 [shape = 'u32[144,128]{1,0:T(1,128)}', space=vmem, size = 0x12000, scoped, tag = 'internal scratch']
  #allocation2 [shape = 's32[1]{0}', space=sflag, size = 0x4, scoped, tag = 'scratch operand']
  #allocation3 [shape = 's32[]', space=sflag, size = 0x4, offset = 0, fixed_abs, tag = 'sflag constant byte address 0x0 - dummy sync flag']
  #allocation4 [shape = 'u32[0]{0}', space=smem, size = 0, offset = 0, fixed_abs, tag = 'smem constant byte address 0x0 - null']
  %s0 = inlined_call_operand.hbm [shape: f32[2,1024], index: 0, kind: input, shape index: {}]
  %s1 = inlined_call_operand.hbm [shape: f32[2,1024], index: 1, kind: output, shape index: {}]
  %s2 = sld [smem:[#allocation0]]
  $region2: #{tpu_custom_call.1} parent=0
    _
  %s4 = ssub.s32 1, %s2
  %s5 = scalar_select 0, %s4, %s2
  %s7 = sshll.u32 1, 14
  %s8 = sxor.u32 4294967295, %s7
  %12 = dma.general %s0, 256, %s1, [#allocation2], 131072, [#allocation4], 0, 0
  %s13 = smul.u32 2, 1
  %s14 = smul.u32 %s13, 8
  %s15 = sshll.u32 %s14, 4
  %16 = dma.done [#allocation2], %s15
  %17 = vsyncmov [#allocation2]
  %s18 = vpop.sfrf %17
  %p19 = scmp.eq.s32.totalorder %s18, 0
  %p20 = pneg %p19
  %22 = shalt.err (%p20)

</llo_original>
